<compile_context>
chip_gen: v5e
topology: v5e:2x2
jax: 0.10.0
libtpu: 0.0.40
codegen_flags: <defaults>
</compile_context>

<pallas_src>
import functools

import jax
import jax.numpy as jnp
from jax.experimental import pallas as pl
from jax.experimental.pallas import tpu as pltpu

EPS = 1e-5
OUT_FEATS = 512


def _bottleneck_kernel(x_ref, wT_ref, gamma_ref, beta_ref, alpha_ref,
                       o_ref, stats_ref, *, n_rows, tile_n, needs_mask):
    phase = pl.program_id(0)   # 0: accumulate batch stats, 1: normalize + PReLU
    tile = pl.program_id(1)    # batch-tile index

    # Linear: (TILE_N, F) @ (F, 512) on the MXU, f32 accumulation.
    # Bias omitted: it cancels exactly under training-mode BatchNorm.
    y = jnp.dot(x_ref[...], wT_ref[...], preferred_element_type=jnp.float32)

    @pl.when((phase == 0) & (tile == 0))
    def _init():
        stats_ref[...] = jnp.zeros_like(stats_ref)

    @pl.when(phase == 0)
    def _accumulate():
        if needs_mask:
            rows = tile * tile_n + jax.lax.broadcasted_iota(
                jnp.int32, (tile_n, 1), 0)
            valid = rows < n_rows
            y_sum = jnp.where(valid, y, 0.0)
            y_sq = jnp.where(valid, y * y, 0.0)
        else:
            y_sum = y
            y_sq = y * y
        stats_ref[0:1, :] += jnp.sum(y_sum, axis=0, keepdims=True)
        stats_ref[1:2, :] += jnp.sum(y_sq, axis=0, keepdims=True)

    @pl.when(phase == 1)
    def _normalize():
        # Fold BN into a per-feature scale/shift once (first phase-1 tile).
        @pl.when(tile == 0)
        def _fold():
            inv_n = jnp.float32(1.0 / n_rows)
            mean = stats_ref[0:1, :] * inv_n
            var = jnp.maximum(stats_ref[1:2, :] * inv_n - mean * mean, 0.0)
            s = gamma_ref[...] * jax.lax.rsqrt(var + EPS)
            t = beta_ref[...] - s * mean
            stats_ref[0:1, :] = s
            stats_ref[1:2, :] = t

        s = stats_ref[0:1, :]
        t = stats_ref[1:2, :]
        z = y * s + t                     # single broadcasted FMA over the tile
        a = alpha_ref[0]                  # shared PReLU slope (SMEM scalar)
        o_ref[...] = jnp.where(z >= 0.0, z, a * z)


def _choose_tile_n(n, f):
    """Largest batch tile (multiple of 8) whose double-buffered x/out tiles stay
    well inside the smallest per-generation VMEM budget (v7x: 64 MiB)."""
    budget = 24 * 1024 * 1024
    for t in (2048, 1024, 512, 256, 128, 64, 32, 16, 8):
        if t > n:
            continue
        est = 2 * t * f * 4 + 2 * t * OUT_FEATS * 4
        if est <= budget:
            return t
    return n  # n < 8: single full-extent tile


def bottleneck_forward(x, w_t, gamma, beta, alpha, *, use_bf16_matmul=False):
    """x: (N, in_feats) f32; w_t: (in_feats, 512) pre-transposed Linear weight;
    gamma/beta: (512,); alpha: scalar PReLU slope."""
    n, f = x.shape
    assert w_t.shape == (f, OUT_FEATS)

    tile_n = _choose_tile_n(n, f)
    num_tiles = pl.cdiv(n, tile_n)
    needs_mask = (n % tile_n) != 0

    if use_bf16_matmul:
        # bf16 MXU inputs (f32 accumulation); pays off on v6e/v7x at large N.
        x = x.astype(jnp.bfloat16)
        w_t = w_t.astype(jnp.bfloat16)

    g2 = gamma.reshape(1, OUT_FEATS).astype(jnp.float32)
    b2 = beta.reshape(1, OUT_FEATS).astype(jnp.float32)
    a1 = jnp.asarray(alpha, jnp.float32).reshape(1)

    itm = jnp.dtype(x.dtype).itemsize
    vmem_est = (2 * tile_n * f * itm            # x tile, double-buffered
                + 2 * tile_n * OUT_FEATS * 4    # out tile, double-buffered
                + 2 * f * OUT_FEATS * itm       # resident W^T (conservative x2)
                + 4 * OUT_FEATS * 4             # gamma / beta
                + 2 * OUT_FEATS * 4)            # stats scratch
    vmem_limit = min(max(2 * vmem_est, 32 * 1024 * 1024), 48 * 1024 * 1024)

    kernel = functools.partial(
        _bottleneck_kernel, n_rows=n, tile_n=tile_n, needs_mask=needs_mask)

    return pl.pallas_call(
        kernel,
        out_shape=jax.ShapeDtypeStruct((n, OUT_FEATS), jnp.float32),
        grid_spec=pltpu.PrefetchScalarGridSpec(
            num_scalar_prefetch=0,
            grid=(2, num_tiles),
            in_specs=[
                pl.BlockSpec((tile_n, f), lambda p, i: (i, 0)),         # x
                pl.BlockSpec((f, OUT_FEATS), lambda p, i: (0, 0)),      # W^T
                pl.BlockSpec((1, OUT_FEATS), lambda p, i: (0, 0)),      # gamma
                pl.BlockSpec((1, OUT_FEATS), lambda p, i: (0, 0)),      # beta
                pl.BlockSpec(memory_space=pltpu.MemorySpace.SMEM),      # alpha
            ],
            # Output block index frozen at 0 during phase 0 (nothing valid to
            # write yet) -> each output tile hits HBM exactly once, in phase 1.
            out_specs=pl.BlockSpec((tile_n, OUT_FEATS), lambda p, i: (i * p, 0)),
            scratch_shapes=[pltpu.VMEM((2, OUT_FEATS), jnp.float32)],
        ),
        compiler_params=pltpu.CompilerParams(
            # Both axes share the stats scratch across iterations -> arbitrary.
            dimension_semantics=("arbitrary", "arbitrary"),
            vmem_limit_bytes=vmem_limit,
        ),
    )(x, w_t, g2, b2, a1)


def init_params(key, in_feats):
    # nn.init.kaiming_normal_(w, a=1): std = sqrt(2/(1+a^2)/fan_in) = 1/sqrt(fan_in).
    # Weight stored pre-transposed as (in_feats, 512) so the wrapper never pays
    # a per-call XLA transpose (i.i.d. normal => same distribution as torch's
    # (512, in_feats) weight transposed).
    std = (1.0 / in_feats) ** 0.5
    w_t = std * jax.random.normal(key, (in_feats, OUT_FEATS), dtype=jnp.float32)
    gamma = jnp.ones((OUT_FEATS,), jnp.float32)    # BatchNorm1d weight init
    beta = jnp.zeros((OUT_FEATS,), jnp.float32)    # BatchNorm1d bias init
    alpha = jnp.float32(0.25)                      # PReLU default shared slope
    # Linear bias (constant_(0)) is omitted: it cancels under batch-stat BN.
    return w_t, gamma, beta, alpha


def reference_forward(x, w_t, gamma, beta, alpha):
    y = x @ w_t                                    # bias = 0 (cancels under BN)
    mean = jnp.mean(y, axis=0, keepdims=True)
    var = jnp.mean((y - mean) ** 2, axis=0, keepdims=True)
    z = gamma * (y - mean) / jnp.sqrt(var + EPS) + beta
    return jnp.where(z >= 0.0, z, alpha * z)


if __name__ == "__main__":
    in_feats = 32
    batch = 8

    key = jax.random.PRNGKey(0)
    kx, kw = jax.random.split(key)
    x = jax.random.normal(kx, (batch, in_feats), dtype=jnp.float32)
    w_t, gamma, beta, alpha = init_params(kw, in_feats)

    out = bottleneck_forward(x, w_t, gamma, beta, alpha)
    out = jax.block_until_ready(out)
    ref = reference_forward(x, w_t, gamma, beta, alpha)
    assert out.shape == (batch, OUT_FEATS)
    assert jnp.allclose(out, ref, atol=1e-4, rtol=1e-4), float(
        jnp.max(jnp.abs(out - ref)))

    # Exercise the multi-tile path with a masked tail tile (N not a multiple of
    # the batch tile).
    n2 = 300
    x2 = jax.random.normal(jax.random.PRNGKey(1), (n2, in_feats), jnp.float32)
    out2 = jax.block_until_ready(bottleneck_forward(x2, w_t, gamma, beta, alpha))
    ref2 = reference_forward(x2, w_t, gamma, beta, alpha)
    assert jnp.allclose(out2, ref2, atol=1e-4, rtol=1e-4), float(
        jnp.max(jnp.abs(out2 - ref2)))

    print("KERNEL_OK")
</pallas_src>

<mosaic_0001>
module attributes {stable_mosaic.version = 11 : i64} {
  func.func @_bottleneck_kernel(%arg0: i32, %arg1: i32, %arg2: memref<8x32xf32, #tpu.memory_space<vmem>>, %arg3: memref<32x512xf32, #tpu.memory_space<vmem>>, %arg4: memref<1x512xf32, #tpu.memory_space<vmem>>, %arg5: memref<1x512xf32, #tpu.memory_space<vmem>>, %arg6: memref<1xf32, #tpu.memory_space<smem>>, %arg7: memref<8x512xf32, #tpu.memory_space<vmem>>, %arg8: memref<2x512xf32, #tpu.memory_space<vmem>>) attributes {dimension_semantics = [#tpu.dimension_semantics<arbitrary>, #tpu.dimension_semantics<arbitrary>], iteration_bounds = array<i64: 2, 1>, scalar_prefetch = 0 : i64, scratch_operands = 1 : i64, tpu.core_type = #tpu.core_type<tc>, window_params = [{transform_indices = @transform_0, window_bounds = array<i64: 8, 32>}, {pipeline_mode = #tpu.pipeline_mode<synchronous>, transform_indices = @transform_1, window_bounds = array<i64: 32, 512>}, {pipeline_mode = #tpu.pipeline_mode<synchronous>, transform_indices = @transform_2, window_bounds = array<i64: 1, 512>}, {pipeline_mode = #tpu.pipeline_mode<synchronous>, transform_indices = @transform_3, window_bounds = array<i64: 1, 512>}, {transform_indices = @transform_4, window_bounds = array<i64: 1>}, {transform_indices = @transform_5, window_bounds = array<i64: 8, 512>}]} {
    %c0 = arith.constant 0 : index
    %c0_0 = arith.constant 0 : index
    %0 = vector.load %arg2[%c0, %c0_0] : memref<8x32xf32, #tpu.memory_space<vmem>>, vector<8x32xf32>
    %c0_1 = arith.constant 0 : index
    %c0_2 = arith.constant 0 : index
    %1 = vector.load %arg3[%c0_1, %c0_2] : memref<32x512xf32, #tpu.memory_space<vmem>>, vector<32x512xf32>
    %cst = arith.constant dense<0.000000e+00> : vector<8x512xf32>
    %2 = tpu.matmul %0, %1, %cst {dimension_numbers = #tpu.dot_dimension_numbers<[1], [0], [0], [1], [0, 0, 1, 1], [], []>} : vector<8x32xf32>, vector<32x512xf32>, vector<8x512xf32> -> vector<8x512xf32>
    %c0_i32 = arith.constant 0 : i32
    %3 = arith.cmpi eq, %arg0, %c0_i32 : i32
    %c0_i32_3 = arith.constant 0 : i32
    %4 = arith.cmpi eq, %arg1, %c0_i32_3 : i32
    %5 = arith.andi %3, %4 : i1
    %6 = arith.extui %5 : i1 to i32
    %c0_i32_4 = arith.constant 0 : i32
    %7 = arith.cmpi ne, %6, %c0_i32_4 : i32
    scf.if %7 {
      %cst_8 = arith.constant 0.000000e+00 : f32
      %14 = vector.broadcast %cst_8 : f32 to vector<2x512xf32>
      %c0_9 = arith.constant 0 : index
      %c0_10 = arith.constant 0 : index
      %15 = vector.load %arg8[%c0_9, %c0_10] : memref<2x512xf32, #tpu.memory_space<vmem>>, vector<2x512xf32>
      tpu.vector_store %arg8[%c0_9, %c0_10], %14 {strides = array<i32>} : memref<2x512xf32, #tpu.memory_space<vmem>>, vector<2x512xf32>,
    } else {
    }
    %c0_i32_5 = arith.constant 0 : i32
    %8 = arith.cmpi eq, %arg0, %c0_i32_5 : i32
    %9 = arith.extui %8 : i1 to i32
    %c0_i32_6 = arith.constant 0 : i32
    %10 = arith.cmpi ne, %9, %c0_i32_6 : i32
    scf.if %10 {
      %14 = arith.mulf %2, %2 : vector<8x512xf32>
      %c0_8 = arith.constant 0 : index
      %c0_9 = arith.constant 0 : index
      %15 = vector.load %arg8[%c0_8, %c0_9] : memref<2x512xf32, #tpu.memory_space<vmem>>, vector<1x512xf32>
      %cst_10 = arith.constant dense<0.000000e+00> : vector<512xf32>
      %16 = vector.multi_reduction <add>, %2, %cst_10 [0] : vector<8x512xf32> to vector<512xf32>
      %17 = vector.shape_cast %16 : vector<512xf32> to vector<1x512xf32>
      %18 = arith.addf %15, %17 : vector<1x512xf32>
      %c0_11 = arith.constant 0 : index
      %c0_12 = arith.constant 0 : index
      %19 = vector.load %arg8[%c0_11, %c0_12] : memref<2x512xf32, #tpu.memory_space<vmem>>, vector<1x512xf32>
      tpu.vector_store %arg8[%c0_11, %c0_12], %18 {strides = array<i32>} : memref<2x512xf32, #tpu.memory_space<vmem>>, vector<1x512xf32>,
      %c1 = arith.constant 1 : index
      %c0_13 = arith.constant 0 : index
      %20 = vector.load %arg8[%c1, %c0_13] : memref<2x512xf32, #tpu.memory_space<vmem>>, vector<1x512xf32>
      %cst_14 = arith.constant dense<0.000000e+00> : vector<512xf32>
      %21 = vector.multi_reduction <add>, %14, %cst_14 [0] : vector<8x512xf32> to vector<512xf32>
      %22 = vector.shape_cast %21 : vector<512xf32> to vector<1x512xf32>
      %23 = arith.addf %20, %22 : vector<1x512xf32>
      %c1_15 = arith.constant 1 : index
      %c0_16 = arith.constant 0 : index
      %24 = vector.load %arg8[%c1_15, %c0_16] : memref<2x512xf32, #tpu.memory_space<vmem>>, vector<1x512xf32>
      tpu.vector_store %arg8[%c1_15, %c0_16], %23 {strides = array<i32>} : memref<2x512xf32, #tpu.memory_space<vmem>>, vector<1x512xf32>,
    } else {
    }
    %c1_i32 = arith.constant 1 : i32
    %11 = arith.cmpi eq, %arg0, %c1_i32 : i32
    %12 = arith.extui %11 : i1 to i32
    %c0_i32_7 = arith.constant 0 : i32
    %13 = arith.cmpi ne, %12, %c0_i32_7 : i32
    scf.if %13 {
      %c0_i32_8 = arith.constant 0 : i32
      %14 = arith.cmpi eq, %arg1, %c0_i32_8 : i32
      %15 = arith.extui %14 : i1 to i32
      %c0_i32_9 = arith.constant 0 : i32
      %16 = arith.cmpi ne, %15, %c0_i32_9 : i32
      scf.if %16 {
        %c0_17 = arith.constant 0 : index
        %c0_18 = arith.constant 0 : index
        %30 = vector.load %arg8[%c0_17, %c0_18] : memref<2x512xf32, #tpu.memory_space<vmem>>, vector<1x512xf32>
        %cst_19 = arith.constant 1.250000e-01 : f32
        %31 = vector.broadcast %cst_19 : f32 to vector<1x512xf32>
        %32 = arith.mulf %30, %31 : vector<1x512xf32>
        %c1_20 = arith.constant 1 : index
        %c0_21 = arith.constant 0 : index
        %33 = vector.load %arg8[%c1_20, %c0_21] : memref<2x512xf32, #tpu.memory_space<vmem>>, vector<1x512xf32>
        %cst_22 = arith.constant 1.250000e-01 : f32
        %34 = vector.broadcast %cst_22 : f32 to vector<1x512xf32>
        %35 = arith.mulf %33, %34 : vector<1x512xf32>
        %36 = arith.mulf %32, %32 : vector<1x512xf32>
        %37 = arith.subf %35, %36 : vector<1x512xf32>
        %cst_23 = arith.constant 0.000000e+00 : f32
        %38 = vector.broadcast %cst_23 : f32 to vector<1x512xf32>
        %39 = arith.maximumf %37, %38 : vector<1x512xf32>
        %c0_24 = arith.constant 0 : index
        %c0_25 = arith.constant 0 : index
        %40 = vector.load %arg4[%c0_24, %c0_25] : memref<1x512xf32, #tpu.memory_space<vmem>>, vector<1x512xf32>
        %cst_26 = arith.constant 9.99999974E-6 : f32
        %41 = vector.broadcast %cst_26 : f32 to vector<1x512xf32>
        %42 = arith.addf %39, %41 : vector<1x512xf32>
        %43 = math.rsqrt %42 : vector<1x512xf32>
        %44 = arith.mulf %40, %43 : vector<1x512xf32>
        %c0_27 = arith.constant 0 : index
        %c0_28 = arith.constant 0 : index
        %45 = vector.load %arg5[%c0_27, %c0_28] : memref<1x512xf32, #tpu.memory_space<vmem>>, vector<1x512xf32>
        %46 = arith.mulf %44, %32 : vector<1x512xf32>
        %47 = arith.subf %45, %46 : vector<1x512xf32>
        %c0_29 = arith.constant 0 : index
        %c0_30 = arith.constant 0 : index
        %48 = vector.load %arg8[%c0_29, %c0_30] : memref<2x512xf32, #tpu.memory_space<vmem>>, vector<1x512xf32>
        tpu.vector_store %arg8[%c0_29, %c0_30], %44 {strides = array<i32>} : memref<2x512xf32, #tpu.memory_space<vmem>>, vector<1x512xf32>,
        %c1_31 = arith.constant 1 : index
        %c0_32 = arith.constant 0 : index
        %49 = vector.load %arg8[%c1_31, %c0_32] : memref<2x512xf32, #tpu.memory_space<vmem>>, vector<1x512xf32>
        tpu.vector_store %arg8[%c1_31, %c0_32], %47 {strides = array<i32>} : memref<2x512xf32, #tpu.memory_space<vmem>>, vector<1x512xf32>,
      } else {
      }
      %c0_10 = arith.constant 0 : index
      %c0_11 = arith.constant 0 : index
      %17 = vector.load %arg8[%c0_10, %c0_11] : memref<2x512xf32, #tpu.memory_space<vmem>>, vector<1x512xf32>
      %c1 = arith.constant 1 : index
      %c0_12 = arith.constant 0 : index
      %18 = vector.load %arg8[%c1, %c0_12] : memref<2x512xf32, #tpu.memory_space<vmem>>, vector<1x512xf32>
      %19 = vector.broadcast %17 : vector<1x512xf32> to vector<8x512xf32>
      %20 = arith.mulf %2, %19 : vector<8x512xf32>
      %21 = vector.broadcast %18 : vector<1x512xf32> to vector<8x512xf32>
      %22 = arith.addf %20, %21 : vector<8x512xf32>
      %c0_13 = arith.constant 0 : index
      %23 = memref.load %arg6[%c0_13] : memref<1xf32, #tpu.memory_space<smem>>
      %cst_14 = arith.constant 0.000000e+00 : f32
      %24 = vector.broadcast %cst_14 : f32 to vector<8x512xf32>
      %25 = arith.cmpf oge, %22, %24 : vector<8x512xf32>
      %26 = vector.broadcast %23 : f32 to vector<8x512xf32>
      %27 = arith.mulf %26, %22 : vector<8x512xf32>
      %28 = arith.select %25, %22, %27 : vector<8x512xi1>, vector<8x512xf32>
      %c0_15 = arith.constant 0 : index
      %c0_16 = arith.constant 0 : index
      %29 = vector.load %arg7[%c0_15, %c0_16] : memref<8x512xf32, #tpu.memory_space<vmem>>, vector<8x512xf32>
      tpu.vector_store %arg7[%c0_15, %c0_16], %28 {strides = array<i32>} : memref<8x512xf32, #tpu.memory_space<vmem>>, vector<8x512xf32>,
    } else {
    }
    return
  }
  func.func @transform_0(%arg0: i32, %arg1: i32) -> (i32, i32) {
    %c0_i32 = arith.constant 0 : i32
    %c0_i32_0 = arith.constant 0 : i32
    return %arg1, %c0_i32 : i32, i32
  }
  func.func @transform_1(%arg0: i32, %arg1: i32) -> (i32, i32) {
    %c0_i32 = arith.constant 0 : i32
    %c0_i32_0 = arith.constant 0 : i32
    %c0_i32_1 = arith.constant 0 : i32
    return %c0_i32, %c0_i32_0 : i32, i32
  }
  func.func @transform_2(%arg0: i32, %arg1: i32) -> (i32, i32) {
    %c0_i32 = arith.constant 0 : i32
    %c0_i32_0 = arith.constant 0 : i32
    %c0_i32_1 = arith.constant 0 : i32
    return %c0_i32, %c0_i32_0 : i32, i32
  }
  func.func @transform_3(%arg0: i32, %arg1: i32) -> (i32, i32) {
    %c0_i32 = arith.constant 0 : i32
    %c0_i32_0 = arith.constant 0 : i32
    %c0_i32_1 = arith.constant 0 : i32
    return %c0_i32, %c0_i32_0 : i32, i32
  }
  func.func @transform_4(%arg0: i32, %arg1: i32) -> i32 {
    %c0_i32 = arith.constant 0 : i32
    %c0_i32_0 = arith.constant 0 : i32
    return %c0_i32 : i32
  }
  func.func @transform_5(%arg0: i32, %arg1: i32) -> (i32, i32) {
    %0 = arith.muli %arg1, %arg0 : i32
    %c0_i32 = arith.constant 0 : i32
    %c0_i32_0 = arith.constant 0 : i32
    return %0, %c0_i32 : i32, i32
  }
}

</mosaic_0001>

<llo_original>
// kernel: tpu_custom_call.1
$region0: #{tpu_custom_call.1}
  #allocation0 [shape = 'u32[]', space=smem, size = 0x4, offset = 0x4, fixed_abs, tag = 'smem constant byte address 0x4 - core index']
  #allocation1 [shape = 'u32[72,128]{1,0:T(1,128)}', space=vmem, size = 0x9000, scoped, tag = 'internal scratch']
  #allocation2 [shape = 'f32[2,512]{1,0:T(2,128)}', space=vmem, size = 0x1000, scoped, tag = 'scratch operand']
  #allocation3 [shape = 'f32[1]{0:T(128)S(6)}', space=smem, size = 0x200, scoped, tag = 'scoped memory for tpu_custom_call.1']
  %s0 = inlined_call_operand.hbm [shape: f32[8,32], index: 0, kind: input, shape index: {}]
  %s1 = inlined_call_operand.hbm [shape: f32[32,512], index: 1, kind: input, shape index: {}]
  %s2 = inlined_call_operand.hbm [shape: f32[1,512], index: 2, kind: input, shape index: {}]
  %s3 = inlined_call_operand.vmem [shape: f32[1,512], index: 3, kind: input, shape index: {}]
  %s4 = inlined_call_operand.<no memory space> [shape: f32[1], index: 4, kind: input, shape index: {}]
  %s5 = inlined_call_operand.hbm [shape: f32[8,512], index: 5, kind: output, shape index: {}]
  %s6 = sld [smem:[#allocation0]]
  $region81: #{tpu_custom_call.1} parent=0
    _
  %s8 = ssub.s32 1, %s6
  %s9 = scalar_select 0, %s8, %s6
  %10 = sst [smem:[#allocation3]] %s4
  $region1: #{tpu_custom_call.1} parent=0
    #allocation4 [shape = 'u8[4096]{0}', space=vmem, size = 0x1000, scoped, tag = 'input window, operand 0, single buffered']
    #allocation5 [shape = 's32[2]{0}', space=sflag, size = 0x8, scoped, tag = 'scoped memory for tpu_custom_call.1']
    #allocation6 [shape = 's32[2]{0}', space=sflag, size = 0x8, scoped, tag = 'scoped memory for tpu_custom_call.1']
    #allocation7 [shape = 'u8[65536]{0}', space=vmem, size = 0x10000, scoped, tag = 'input window, operand 1, single buffered']
    #allocation8 [shape = 's32[1]{0}', space=sflag, size = 0x4, scoped, tag = 'scoped memory for tpu_custom_call.1']
    #allocation9 [shape = 'u8[2048]{0}', space=vmem, size = 0x800, scoped, tag = 'input window, operand 2, single buffered']
    #allocation10 [shape = 'u8[32768]{0}', space=vmem, size = 0x8000, scoped, tag = 'output window, operand 0']
    %11 = vsyncpa [#allocation5], 0
    %12 = vsyncpa [#allocation8], 0
    %13 = vsyncpa [#allocation6], 0
    %s14 = scalar_lea.sflag [#allocation6], 1
    %15 = vsyncpa %s14, 0
    loop: start=0, step=1, limit=4
    $region2: #{tpu_custom_call.1} parent=1 // loop_pre_header
      _
    $region3: #{tpu_custom_call.1} parent=1 // loop_header
      %s17 = sphi 0, %s21
      %p18 = scmp.ge.s32.totalorder %s17, 4
      %s24 = sphi 0, %s36
      %s25 = sphi 0, %s32
      %s26 = sphi 0, %s24
      %s27 = sphi 0, %s25
      %s28 = sphi 0, %s26
      %s29 = sphi 0, %s27
      %s39 = sphi 0, %s41
      %s42 = sphi 0, %s39
      %s43 = sphi 0, %s42
      %s59 = sphi 0, %s43
      %s63 = sphi 0, %s63
      %s65 = sphi 0, %s63
      %s66 = sphi 0, %s65
      %s80 = sphi 0, %s66
      %s84 = sphi 0, %s84
      %s86 = sphi 0, %s84
      %s87 = sphi 0, %s86
      %s101 = sphi 0, %s87
      %s105 = sphi 0, %s105
      %s107 = sphi 0, %s105
      %s108 = sphi 0, %s107
      %s122 = sphi 0, %s108
      %s126 = sphi 0, %s126
      %s128 = sphi 0, %s126
      %s129 = sphi 0, %s128
      %s143 = sphi 0, %s129
      %s151 = sphi 0, %s153
      %s154 = sphi 0, %s151
      %s155 = sphi 0, %s154
      %s171 = sphi 0, %s155
    $region4: #{tpu_custom_call.1} parent=1 // loop_header_branch
      %20 = sbr.rel (%p18) target = $region8
    $region5: #{tpu_custom_call.1} parent=1 // loop_body
      %s22 = ssub.s32 %s17, 1
      %s23 = ssub.s32 %s17, 2
      %s30 = sadd.s32 1, %s25
      %p31 = scmp.ge.s32.totalorder %s30, 1
      %s32 = scalar_select %p31, 0, %s30
      %s33 = sadd.s32 1, %s24
      %s34 = scalar_select %p31, %s33, %s24
      %p35 = scmp.ge.s32.totalorder %s34, 2
      %s36 = scalar_select %p35, 0, %s34
      %s37 = ssub.s32 %s25, %s32
      %p38 = scmp.eq.s32.totalorder %s37, 0
      %s40 = sadd.s32 %s39, 1
      %s41 = scalar_select %p38, %s39, %s40
      %p44 = pneg %p38
      %p45 = scmp.eq.s32.totalorder %s17, 1
      %p46 = por %p44, %p45
      %p47 = scmp.ne.s32.totalorder %s39, %s42
      %p48 = scmp.eq.s32.totalorder %s17, 0
      %p49 = por %p47, %p48
      %p50 = scmp.ne.s32.totalorder %s39, %s42
      %p51 = scmp.eq.s32.totalorder %s22, 1
      %p52 = por %p50, %p51
      %p53 = scmp.ne.s32.totalorder %s42, %s43
      %p54 = scmp.eq.s32.totalorder %s22, 0
      %p55 = por %p53, %p54
      %p56 = scmp.ne.s32.totalorder %s42, %s43
      %p57 = scmp.eq.s32.totalorder %s23, 1
      %p58 = por %p56, %p57
      %p60 = scmp.ne.s32.totalorder %s43, %s59
      %p61 = scmp.eq.s32.totalorder %s23, 0
      %p62 = por %p60, %p61
      %s64 = sadd.s32 %s63, 1
      %p67 = scmp.eq.s32.totalorder %s17, 1
      %p68 = scmp.ne.s32.totalorder %s63, %s65
      %p69 = scmp.eq.s32.totalorder %s17, 0
      %p70 = por %p68, %p69
      %p71 = scmp.ne.s32.totalorder %s63, %s65
      %p72 = scmp.eq.s32.totalorder %s22, 1
      %p73 = por %p71, %p72
      %p74 = scmp.ne.s32.totalorder %s65, %s66
      %p75 = scmp.eq.s32.totalorder %s22, 0
      %p76 = por %p74, %p75
      %p77 = scmp.ne.s32.totalorder %s65, %s66
      %p78 = scmp.eq.s32.totalorder %s23, 1
      %p79 = por %p77, %p78
      %p81 = scmp.ne.s32.totalorder %s66, %s80
      %p82 = scmp.eq.s32.totalorder %s23, 0
      %p83 = por %p81, %p82
      %s85 = sadd.s32 %s84, 1
      %p88 = scmp.eq.s32.totalorder %s17, 1
      %p89 = scmp.ne.s32.totalorder %s84, %s86
      %p90 = scmp.eq.s32.totalorder %s17, 0
      %p91 = por %p89, %p90
      %p92 = scmp.ne.s32.totalorder %s84, %s86
      %p93 = scmp.eq.s32.totalorder %s22, 1
      %p94 = por %p92, %p93
      %p95 = scmp.ne.s32.totalorder %s86, %s87
      %p96 = scmp.eq.s32.totalorder %s22, 0
      %p97 = por %p95, %p96
      %p98 = scmp.ne.s32.totalorder %s86, %s87
      %p99 = scmp.eq.s32.totalorder %s23, 1
      %p100 = por %p98, %p99
      %p102 = scmp.ne.s32.totalorder %s87, %s101
      %p103 = scmp.eq.s32.totalorder %s23, 0
      %p104 = por %p102, %p103
      %s106 = sadd.s32 %s105, 1
      %p109 = scmp.eq.s32.totalorder %s17, 1
      %p110 = scmp.ne.s32.totalorder %s105, %s107
      %p111 = scmp.eq.s32.totalorder %s17, 0
      %p112 = por %p110, %p111
      %p113 = scmp.ne.s32.totalorder %s105, %s107
      %p114 = scmp.eq.s32.totalorder %s22, 1
      %p115 = por %p113, %p114
      %p116 = scmp.ne.s32.totalorder %s107, %s108
      %p117 = scmp.eq.s32.totalorder %s22, 0
      %p118 = por %p116, %p117
      %p119 = scmp.ne.s32.totalorder %s107, %s108
      %p120 = scmp.eq.s32.totalorder %s23, 1
      %p121 = por %p119, %p120
      %p123 = scmp.ne.s32.totalorder %s108, %s122
      %p124 = scmp.eq.s32.totalorder %s23, 0
      %p125 = por %p123, %p124
      %s127 = sadd.s32 %s126, 1
      %p130 = scmp.eq.s32.totalorder %s17, 1
      %p131 = scmp.ne.s32.totalorder %s126, %s128
      %p132 = scmp.eq.s32.totalorder %s17, 0
      %p133 = por %p131, %p132
      %p134 = scmp.ne.s32.totalorder %s126, %s128
      %p135 = scmp.eq.s32.totalorder %s22, 1
      %p136 = por %p134, %p135
      %p137 = scmp.ne.s32.totalorder %s128, %s129
      %p138 = scmp.eq.s32.totalorder %s22, 0
      %p139 = por %p137, %p138
      %p140 = scmp.ne.s32.totalorder %s128, %s129
      %p141 = scmp.eq.s32.totalorder %s23, 1
      %p142 = por %p140, %p141
      %p144 = scmp.ne.s32.totalorder %s129, %s143
      %p145 = scmp.eq.s32.totalorder %s23, 0
      %p146 = por %p144, %p145
      %s147 = smul.u32 %s25, %s24
      %s148 = smul.u32 %s32, %s36
      %s149 = ssub.s32 %s147, %s148
      %p150 = scmp.eq.s32.totalorder %s149, 0
      %s152 = sadd.s32 %s151, 1
      %s153 = scalar_select %p150, %s151, %s152
      %p156 = pneg %p150
      %p157 = scmp.eq.s32.totalorder %s17, 1
      %p158 = por %p156, %p157
      %p159 = scmp.ne.s32.totalorder %s151, %s154
      %p160 = scmp.eq.s32.totalorder %s17, 0
      %p161 = por %p159, %p160
      %p162 = scmp.ne.s32.totalorder %s151, %s154
      %p163 = scmp.eq.s32.totalorder %s22, 1
      %p164 = por %p162, %p163
      %p165 = scmp.ne.s32.totalorder %s154, %s155
      %p166 = scmp.eq.s32.totalorder %s22, 0
      %p167 = por %p165, %p166
      %p168 = scmp.ne.s32.totalorder %s154, %s155
      %p169 = scmp.eq.s32.totalorder %s23, 1
      %p170 = por %p168, %p169
      %p172 = scmp.ne.s32.totalorder %s155, %s171
      %p173 = scmp.eq.s32.totalorder %s23, 0
      %p174 = por %p172, %p173
      %p175 = scmp.le.s32.totalorder 1, %s17
      %p176 = scmp.lt.s32.totalorder %s17, 3
      %p177 = pnand %p175, %p176
      %p178 = pneg %p177
      // Predicated region
      $region9: #{tpu_custom_call.1} parent=5 // pred_check
        _
      $region10: #{tpu_custom_call.1} parent=5 // pred_check_branch
        %180 = sbr.rel (%p177) target = $region12
      $region11: #{tpu_custom_call.1} parent=5 // pred_region
        %s181 = ssub.s32 %s17, 1
        // Predicated region
        $region13: #{tpu_custom_call.1} parent=11 // pred_check
          %p182 = pneg %p55
        $region14: #{tpu_custom_call.1} parent=11 // pred_check_branch
          %184 = sbr.rel (%p182) target = $region16
        $region15: #{tpu_custom_call.1} parent=11 // pred_region
          %186 = vsyncadd [#allocation5], 0
          %s187 = smul.addr %s27, 8
          %s188 = scalar_lea.hbm %s0, %s187
          %s190 = sshll.u32 %s188, 4
          %s191 = int_to_ptr.hbm [resolvable:$true] %s190
          %s192 = sshll.u32 [#allocation4], 4
          %s193 = int_to_ptr.vmem [resolvable:$true] %s192
          %195 = dma.hbm_to_vmem [thread:$0]  %s191, 128, %s193, [#allocation5]
        $region16: #{tpu_custom_call.1} parent=11 // pred_fallthru
          _
        // Predicated region
        $region17: #{tpu_custom_call.1} parent=11 // pred_check
          %p196 = pneg %p76
        $region18: #{tpu_custom_call.1} parent=11 // pred_check_branch
          %198 = sbr.rel (%p196) target = $region20
        $region19: #{tpu_custom_call.1} parent=11 // pred_region
          %200 = vsyncadd [#allocation8], 0
          %s201 = sshll.u32 %s1, 4
          %s202 = int_to_ptr.hbm [resolvable:$true] %s201
          %s203 = sshll.u32 [#allocation7], 4
          %s204 = int_to_ptr.vmem [resolvable:$true] %s203
          %209 = dma.hbm_to_vmem [thread:$0]  %s202, 2048, %s204, [#allocation8], 512, 512, 32
        $region20: #{tpu_custom_call.1} parent=11 // pred_fallthru
          _
        // Predicated region
        $region21: #{tpu_custom_call.1} parent=11 // pred_check
          %p210 = pneg %p97
        $region22: #{tpu_custom_call.1} parent=11 // pred_check_branch
          %212 = sbr.rel (%p210) target = $region24
        $region23: #{tpu_custom_call.1} parent=11 // pred_region
          %214 = vsyncadd [#allocation8], 0
          %s216 = sshll.u32 %s2, 4
          %s217 = int_to_ptr.hbm [resolvable:$true] %s216
          %s218 = sshll.u32 [#allocation9], 4
          %s219 = int_to_ptr.vmem [resolvable:$true] %s218
          %221 = dma.hbm_to_vmem [thread:$0]  %s217, 64, %s219, [#allocation8]
        $region24: #{tpu_custom_call.1} parent=11 // pred_fallthru
          _
        // Predicated region
        $region25: #{tpu_custom_call.1} parent=11 // pred_check
          %p222 = pneg %p118
        $region26: #{tpu_custom_call.1} parent=11 // pred_check_branch
          %224 = sbr.rel (%p222) target = $region28
        $region27: #{tpu_custom_call.1} parent=11 // pred_region
          _
        $region28: #{tpu_custom_call.1} parent=11 // pred_fallthru
          _
        // Predicated region
        $region29: #{tpu_custom_call.1} parent=11 // pred_check
          %p225 = pneg %p139
        $region30: #{tpu_custom_call.1} parent=11 // pred_check_branch
          %227 = sbr.rel (%p225) target = $region32
        $region31: #{tpu_custom_call.1} parent=11 // pred_region
          _
        $region32: #{tpu_custom_call.1} parent=11 // pred_fallthru
          _
      $region12: #{tpu_custom_call.1} parent=5 // pred_fallthru
        _
      %p228 = scmp.lt.s32.totalorder %s17, 2
      // Predicated region
      $region33: #{tpu_custom_call.1} parent=5 // pred_check
        %p229 = pneg %p228
      $region34: #{tpu_custom_call.1} parent=5 // pred_check_branch
        %231 = sbr.rel (%p229) target = $region36
      $region35: #{tpu_custom_call.1} parent=5 // pred_region
        _
      $region36: #{tpu_custom_call.1} parent=5 // pred_fallthru
        _
      %p232 = scmp.le.s32.totalorder 1, %s17
      %p233 = scmp.lt.s32.totalorder %s17, 3
      %p234 = pnand %p232, %p233
      %p235 = pneg %p234
      // Predicated region
      $region37: #{tpu_custom_call.1} parent=5 // pred_check
        _
      $region38: #{tpu_custom_call.1} parent=5 // pred_check_branch
        %237 = sbr.rel (%p234) target = $region40
      $region39: #{tpu_custom_call.1} parent=5 // pred_region
        %s238 = ssub.s32 %s17, 1
        // Predicated region
        $region41: #{tpu_custom_call.1} parent=39 // pred_check
          %p239 = pneg %p55
        $region42: #{tpu_custom_call.1} parent=39 // pred_check_branch
          %241 = sbr.rel (%p239) target = $region44
        $region43: #{tpu_custom_call.1} parent=39 // pred_region
          %243 = dma.done [#allocation5], 128
        $region44: #{tpu_custom_call.1} parent=39 // pred_fallthru
          _
        // Predicated region
        $region45: #{tpu_custom_call.1} parent=39 // pred_check
          %p244 = pneg %p76
        $region46: #{tpu_custom_call.1} parent=39 // pred_check_branch
          %246 = sbr.rel (%p244) target = $region48
        $region47: #{tpu_custom_call.1} parent=39 // pred_region
          %248 = dma.done [#allocation8], 2048
        $region48: #{tpu_custom_call.1} parent=39 // pred_fallthru
          _
        // Predicated region
        $region49: #{tpu_custom_call.1} parent=39 // pred_check
          %p249 = pneg %p97
        $region50: #{tpu_custom_call.1} parent=39 // pred_check_branch
          %251 = sbr.rel (%p249) target = $region52
        $region51: #{tpu_custom_call.1} parent=39 // pred_region
          %253 = dma.done [#allocation8], 64
        $region52: #{tpu_custom_call.1} parent=39 // pred_fallthru
          _
        %p254 = pneg %p55
        %p255 = pneg %p52
        %p256 = pneg %p76
        %p257 = pneg %p73
        %p258 = pneg %p97
        %p259 = pneg %p94
        %p260 = pneg %p118
        %p261 = pneg %p115
        %p262 = pneg %p139
        %p263 = pneg %p136
        %p264 = pneg %p167
        %p265 = pneg %p164
        %s266 = sand.u32 %s154, 1
        %s267 = scalar_lea.sflag [#allocation6], %s266
        %s268 = sand.u32 %s154, 1
        %s269 = smul.addr %s268, 32
        %s270 = scalar_lea.vmem [#allocation10], %s269
        %s271 = smul.u32 %s27, %s26
        %v272 = vld [vmem:[#allocation4] sm:$0xff]
        %v273 = vld [vmem:[#allocation7] sm:$0xff]
        %v274 = vld [vmem:[#allocation7 + $0x8] sm:$0xff]
        %v275 = vld [vmem:[#allocation7 + $0x10] sm:$0xff]
        %v276 = vld [vmem:[#allocation7 + $0x18] sm:$0xff]
        %v277 = vld [vmem:[#allocation7 + $0x20] sm:$0xff]
        %v278 = vld [vmem:[#allocation7 + $0x28] sm:$0xff]
        %v279 = vld [vmem:[#allocation7 + $0x30] sm:$0xff]
        %v280 = vld [vmem:[#allocation7 + $0x38] sm:$0xff]
        %v281 = vld [vmem:[#allocation7 + $0x40] sm:$0xff]
        %v282 = vld [vmem:[#allocation7 + $0x48] sm:$0xff]
        %v283 = vld [vmem:[#allocation7 + $0x50] sm:$0xff]
        %v284 = vld [vmem:[#allocation7 + $0x58] sm:$0xff]
        %v285 = vld [vmem:[#allocation7 + $0x60] sm:$0xff]
        %v286 = vld [vmem:[#allocation7 + $0x68] sm:$0xff]
        %v287 = vld [vmem:[#allocation7 + $0x70] sm:$0xff]
        %v288 = vld [vmem:[#allocation7 + $0x78] sm:$0xff]
        %vm289 = vcmask 261120
        %v291 = vsel %vm289, %v272, 0
        %293 = vmatpush.msra.mxu0 0.0
        %294 = vmatpush.msra.mxu0 0.0
        %295 = vmatpush.msra.mxu0 0.0
        %296 = vmatpush.msra.mxu0 0.0
        %297 = vmatpush.msra.mxu0 0.0
        %298 = vmatpush.msra.mxu0 0.0
        %299 = vmatpush.msra.mxu0 0.0
        %300 = vmatpush.msra.mxu0 0.0
        %301 = vmatpush.msra.mxu0 0.0
        %302 = vmatpush.msra.mxu0 0.0
        %303 = vmatpush.msra.mxu0 0.0
        %304 = vmatpush.msra.mxu0 0.0
        %305 = vmatpush.msra.mxu0 %v285
        %306 = vmatpush.msra.mxu0 %v281
        %307 = vmatpush.msra.mxu0 %v277
        %308 = vmatpush.msra.mxu0 %v273
        %309 = vmatmul.f32.gmra.mxu0 %v291
        %v310 = vpop.f32.mrf.mxu0
        %v311 = vadd.f32 0.0, %v310
        %312 = vdwg.mxu0
        %313 = vmatpush.msra.mxu0 0.0
        %314 = vmatpush.msra.mxu0 0.0
        %315 = vmatpush.msra.mxu0 0.0
        %316 = vmatpush.msra.mxu0 0.0
        %317 = vmatpush.msra.mxu0 0.0
        %318 = vmatpush.msra.mxu0 0.0
        %319 = vmatpush.msra.mxu0 0.0
        %320 = vmatpush.msra.mxu0 0.0
        %321 = vmatpush.msra.mxu0 0.0
        %322 = vmatpush.msra.mxu0 0.0
        %323 = vmatpush.msra.mxu0 0.0
        %324 = vmatpush.msra.mxu0 0.0
        %325 = vmatpush.msra.mxu0 %v286
        %326 = vmatpush.msra.mxu0 %v282
        %327 = vmatpush.msra.mxu0 %v278
        %328 = vmatpush.msra.mxu0 %v274
        %329 = vmatmul.f32.gmra.mxu0 %v291
        %v330 = vpop.f32.mrf.mxu0
        %v331 = vadd.f32 0.0, %v330
        %332 = vdwg.mxu0
        %333 = vmatpush.msra.mxu0 0.0
        %334 = vmatpush.msra.mxu0 0.0
        %335 = vmatpush.msra.mxu0 0.0
        %336 = vmatpush.msra.mxu0 0.0
        %337 = vmatpush.msra.mxu0 0.0
        %338 = vmatpush.msra.mxu0 0.0
        %339 = vmatpush.msra.mxu0 0.0
        %340 = vmatpush.msra.mxu0 0.0
        %341 = vmatpush.msra.mxu0 0.0
        %342 = vmatpush.msra.mxu0 0.0
        %343 = vmatpush.msra.mxu0 0.0
        %344 = vmatpush.msra.mxu0 0.0
        %345 = vmatpush.msra.mxu0 %v287
        %346 = vmatpush.msra.mxu0 %v283
        %347 = vmatpush.msra.mxu0 %v279
        %348 = vmatpush.msra.mxu0 %v275
        %349 = vmatmul.f32.gmra.mxu0 %v291
        %v350 = vpop.f32.mrf.mxu0
        %v351 = vadd.f32 0.0, %v350
        %352 = vdwg.mxu0
        %353 = vmatpush.msra.mxu0 0.0
        %354 = vmatpush.msra.mxu0 0.0
        %355 = vmatpush.msra.mxu0 0.0
        %356 = vmatpush.msra.mxu0 0.0
        %357 = vmatpush.msra.mxu0 0.0
        %358 = vmatpush.msra.mxu0 0.0
        %359 = vmatpush.msra.mxu0 0.0
        %360 = vmatpush.msra.mxu0 0.0
        %361 = vmatpush.msra.mxu0 0.0
        %362 = vmatpush.msra.mxu0 0.0
        %363 = vmatpush.msra.mxu0 0.0
        %364 = vmatpush.msra.mxu0 0.0
        %365 = vmatpush.msra.mxu0 %v288
        %366 = vmatpush.msra.mxu0 %v284
        %367 = vmatpush.msra.mxu0 %v280
        %368 = vmatpush.msra.mxu0 %v276
        %369 = vmatmul.f32.gmra.mxu0 %v291
        %v370 = vpop.f32.mrf.mxu0
        %v371 = vadd.f32 0.0, %v370
        %372 = vdwg.mxu0
        %p373 = scmp.eq.s32.totalorder %s26, 0
        %p374 = scmp.eq.s32.totalorder %s27, 0
        %p375 = pnand %p373, %p374
        %p376 = pneg %p375
        // Predicated region
        $region53: #{tpu_custom_call.1} parent=39 // pred_check
          _
        $region54: #{tpu_custom_call.1} parent=39 // pred_check_branch
          %378 = sbr.rel (%p375) target = $region56
        $region55: #{tpu_custom_call.1} parent=39 // pred_region
          %379 = vst [vmem:[#allocation2] sm:$0xff] 0.0
        $region56: #{tpu_custom_call.1} parent=39 // pred_fallthru
          _
        // Predicated region
        $region57: #{tpu_custom_call.1} parent=39 // pred_check
          %p380 = pneg %p373
        $region58: #{tpu_custom_call.1} parent=39 // pred_check_branch
          %382 = sbr.rel (%p380) target = $region60
        $region59: #{tpu_custom_call.1} parent=39 // pred_region
          %v383 = vmul.f32 %v311, %v311
          %v384 = vmul.f32 %v331, %v331
          %v385 = vmul.f32 %v351, %v351
          %v386 = vmul.f32 %v371, %v371
          %v387 = vld [vmem:[#allocation2] ss:$2 sm:$0xf]
          %v388 = vrot.slane %v311, 4
          %v389 = vadd.f32 %v311, %v388
          %v390 = vrot.slane %v389, 2
          %v391 = vadd.f32 %v389, %v390
          %v392 = vrot.slane %v391, 1
          %v393 = vadd.f32 %v391, %v392
          %v394 = vrot.slane %v331, 4
          %v395 = vadd.f32 %v331, %v394
          %v396 = vrot.slane %v395, 2
          %v397 = vadd.f32 %v395, %v396
          %v398 = vrot.slane %v397, 1
          %v399 = vadd.f32 %v397, %v398
          %v400 = vrot.slane %v351, 4
          %v401 = vadd.f32 %v351, %v400
          %v402 = vrot.slane %v401, 2
          %v403 = vadd.f32 %v401, %v402
          %v404 = vrot.slane %v403, 1
          %v405 = vadd.f32 %v403, %v404
          %v406 = vrot.slane %v371, 4
          %v407 = vadd.f32 %v371, %v406
          %v408 = vrot.slane %v407, 2
          %v409 = vadd.f32 %v407, %v408
          %v410 = vrot.slane %v409, 1
          %v411 = vadd.f32 %v409, %v410
          %v416 = vrot.slane %v399, 7
          %v417 = vrot.slane %v405, 6
          %v418 = vrot.slane %v411, 5
          %vm419 = vcmask 1040384
          %v420 = vsel %vm419, %v393, %v416
          %vm421 = vcmask 1042434
          %v422 = vsel %vm421, %v417, %v418
          %vm423 = vcmask 1041408
          %v424 = vsel %vm423, %v420, %v422
          %v426 = vadd.f32 %v387, %v424
          %v427 = vlaneseq
          %vm428 = vcmp.ge.s32.totalorder %v427, 0
          %vm429 = vcmp.lt.s32.totalorder %v427, 512
          %vm430 = vmand %vm428, %vm429
          %431 = vst.msk [vmem:[#allocation2] ss:$2 sm:$0xf] %vm430, %v426
          %s432 = scalar_lea.vmem [#allocation2], 1
          %v433 = vld [vmem:[%s432] ss:$2 sm:$0xf]
          %v434 = vrot.slane %v383, 4
          %v435 = vadd.f32 %v383, %v434
          %v436 = vrot.slane %v435, 2
          %v437 = vadd.f32 %v435, %v436
          %v438 = vrot.slane %v437, 1
          %v439 = vadd.f32 %v437, %v438
          %v440 = vrot.slane %v384, 4
          %v441 = vadd.f32 %v384, %v440
          %v442 = vrot.slane %v441, 2
          %v443 = vadd.f32 %v441, %v442
          %v444 = vrot.slane %v443, 1
          %v445 = vadd.f32 %v443, %v444
          %v446 = vrot.slane %v385, 4
          %v447 = vadd.f32 %v385, %v446
          %v448 = vrot.slane %v447, 2
          %v449 = vadd.f32 %v447, %v448
          %v450 = vrot.slane %v449, 1
          %v451 = vadd.f32 %v449, %v450
          %v452 = vrot.slane %v386, 4
          %v453 = vadd.f32 %v386, %v452
          %v454 = vrot.slane %v453, 2
          %v455 = vadd.f32 %v453, %v454
          %v456 = vrot.slane %v455, 1
          %v457 = vadd.f32 %v455, %v456
          %v462 = vrot.slane %v445, 7
          %v463 = vrot.slane %v451, 6
          %v464 = vrot.slane %v457, 5
          %v465 = vsel %vm419, %v439, %v462
          %v466 = vsel %vm421, %v463, %v464
          %v467 = vsel %vm423, %v465, %v466
          %v469 = vadd.f32 %v433, %v467
          %470 = vst.msk [vmem:[%s432] ss:$2 sm:$0xf] %vm430, %v469
        $region60: #{tpu_custom_call.1} parent=39 // pred_fallthru
          _
        %p471 = scmp.eq.s32.totalorder %s26, 1
        // Predicated region
        $region61: #{tpu_custom_call.1} parent=39 // pred_check
          %p472 = pneg %p471
        $region62: #{tpu_custom_call.1} parent=39 // pred_check_branch
          %474 = sbr.rel (%p472) target = $region64
        $region63: #{tpu_custom_call.1} parent=39 // pred_region
          // Predicated region
          $region65: #{tpu_custom_call.1} parent=63 // pred_check
            %p475 = pneg %p374
          $region66: #{tpu_custom_call.1} parent=63 // pred_check_branch
            %477 = sbr.rel (%p475) target = $region68
          $region67: #{tpu_custom_call.1} parent=63 // pred_region
            %v478 = vld [vmem:[#allocation2] ss:$2 sm:$0xf]
            %v479 = vmul.f32 %v478, 0.125
            %s480 = scalar_lea.vmem [#allocation2], 1
            %v481 = vld [vmem:[%s480] ss:$2 sm:$0xf]
            %v482 = vmul.f32 %v481, 0.125
            %v483 = vmul.f32 %v479, %v479
            %v484 = vsub.f32 %v482, %v483
            %v485 = vmax.f32 %v484, 0.0
            %v486 = vld [vmem:[#allocation9] sm:$0xf]
            %v487 = vadd.f32 %v485, 1e-05
            %v488 = vrsqrt.pop %v487
            %v489 = vmul.f32 %v488, %v487
            %v490 = vmul.f32 %v489, %v488
            %v491 = vmul.f32 0.5, %v490
            %v492 = vsub.f32 1.5, %v491
            %v493 = vmul.f32 %v488, %v492
            %vm494 = vweird.f32 %v487
            %vm495 = vweird.f32 %v488
            %vm496 = vmor %vm494, %vm495
            %v497 = vsel %vm496, %v488, %v493
            %v498 = vmul.f32 %v486, %v497
            %v499 = vld [vmem:[%s3] sm:$0xf]
            %v500 = vmul.f32 %v498, %v479
            %v501 = vsub.f32 %v499, %v500
            %v502 = vlaneseq
            %vm503 = vcmp.ge.s32.totalorder %v502, 0
            %vm504 = vcmp.lt.s32.totalorder %v502, 512
            %vm505 = vmand %vm503, %vm504
            %506 = vst.msk [vmem:[#allocation2] ss:$2 sm:$0xf] %vm505, %v498
            %507 = vst.msk [vmem:[%s480] ss:$2 sm:$0xf] %vm505, %v501
          $region68: #{tpu_custom_call.1} parent=63 // pred_fallthru
            _
          %v508 = vld [vmem:[#allocation2] ss:$2 sm:$0xf]
          %s509 = scalar_lea.vmem [#allocation2], 1
          %v510 = vld [vmem:[%s509] ss:$2 sm:$0xf]
          %v512 = vperm.slane %v508, 0
          %v513 = vperm.slane %v508, 1
          %v514 = vperm.slane %v508, 2
          %v515 = vperm.slane %v508, 3
          %v520 = vmul.f32 %v311, %v512
          %v521 = vmul.f32 %v331, %v513
          %v522 = vmul.f32 %v351, %v514
          %v523 = vmul.f32 %v371, %v515
          %v525 = vperm.slane %v510, 0
          %v526 = vperm.slane %v510, 1
          %v527 = vperm.slane %v510, 2
          %v528 = vperm.slane %v510, 3
          %v533 = vadd.f32 %v520, %v525
          %v534 = vadd.f32 %v521, %v526
          %v535 = vadd.f32 %v522, %v527
          %v536 = vadd.f32 %v523, %v528
          %s537 = sld [smem:[#allocation3]]
          %vm538 = vcmp.ge.f32.partialorder %v533, 0.0
          %vm539 = vcmp.ge.f32.partialorder %v534, 0.0
          %vm540 = vcmp.ge.f32.partialorder %v535, 0.0
          %vm541 = vcmp.ge.f32.partialorder %v536, 0.0
          %v542 = vstv %s537
          %v543 = vmul.f32 %v542, %v533
          %v544 = vmul.f32 %v542, %v534
          %v545 = vmul.f32 %v542, %v535
          %v546 = vmul.f32 %v542, %v536
          %v547 = vsel %vm538, %v533, %v543
          %v548 = vsel %vm539, %v534, %v544
          %v549 = vsel %vm540, %v535, %v545
          %v550 = vsel %vm541, %v536, %v546
          %551 = vst [vmem:[%s270] sm:$0xff] %v547
          %552 = vst [vmem:[%s270 + $0x8] sm:$0xff] %v548
          %553 = vst [vmem:[%s270 + $0x10] sm:$0xff] %v549
          %554 = vst [vmem:[%s270 + $0x18] sm:$0xff] %v550
        $region64: #{tpu_custom_call.1} parent=39 // pred_fallthru
          _
        %s555 = sand.u32 %s154, 1
        %s556 = scalar_lea.sflag [#allocation6], %s555
        %s557 = sand.u32 %s154, 1
        %s558 = smul.addr %s557, 32
        %s559 = scalar_lea.vmem [#allocation10], %s558
        // Predicated region
        $region69: #{tpu_custom_call.1} parent=39 // pred_check
          %p560 = pneg %p164
        $region70: #{tpu_custom_call.1} parent=39 // pred_check_branch
          %562 = sbr.rel (%p560) target = $region72
        $region71: #{tpu_custom_call.1} parent=39 // pred_region
          %s563 = smul.u32 %s27, %s26
          %565 = vsyncadd %s556, 0
          %s566 = smul.addr %s563, 4
          %s567 = smul.addr %s566, 8
          %s568 = scalar_lea.hbm %s5, %s567
          %s570 = sshll.u32 %s559, 4
          %s571 = int_to_ptr.vmem [resolvable:$true] %s570
          %s572 = sshll.u32 %s568, 4
          %s573 = int_to_ptr.hbm [resolvable:$true] %s572
          %575 = dma.vmem_to_hbm [thread:$0]  %s571, 512, %s573, %s556
        $region72: #{tpu_custom_call.1} parent=39 // pred_fallthru
          _
      $region40: #{tpu_custom_call.1} parent=5 // pred_fallthru
        _
      %p576 = scmp.le.s32.totalorder 2, %s17
      // Predicated region
      $region73: #{tpu_custom_call.1} parent=5 // pred_check
        %p577 = pneg %p576
      $region74: #{tpu_custom_call.1} parent=5 // pred_check_branch
        %579 = sbr.rel (%p577) target = $region76
      $region75: #{tpu_custom_call.1} parent=5 // pred_region
        %s580 = ssub.s32 %s17, 2
        // Predicated region
        $region77: #{tpu_custom_call.1} parent=75 // pred_check
          %p581 = pneg %p170
        $region78: #{tpu_custom_call.1} parent=75 // pred_check_branch
          %583 = sbr.rel (%p581) target = $region80
        $region79: #{tpu_custom_call.1} parent=75 // pred_region
          %s584 = sand.u32 %s155, 1
          %s585 = scalar_lea.sflag [#allocation6], %s584
          %s586 = sand.u32 %s155, 1
          %s587 = smul.addr %s586, 32
          %s588 = scalar_lea.vmem [#allocation10], %s587
          %590 = dma.done %s585, 512
        $region80: #{tpu_custom_call.1} parent=75 // pred_fallthru
          _
      $region76: #{tpu_custom_call.1} parent=5 // pred_fallthru
        _
    $region6: #{tpu_custom_call.1} parent=1 // loop_footer
      %s21 = sadd.s32 1, %s17
    $region7: #{tpu_custom_call.1} parent=1 // loop_footer_branch
      %16 = sbr.rel target = $region3
    $region8: #{tpu_custom_call.1} parent=1 // loop_exit
      _
    %591 = vsyncpa [#allocation5], 1
    %s592 = scalar_lea.sflag [#allocation5], 1
    %593 = vsyncpa %s592, 1
    %594 = vsyncpa [#allocation8], 1
    %595 = vsyncpa [#allocation6], 1
    %s596 = scalar_lea.sflag [#allocation6], 1
    %597 = vsyncpa %s596, 1

</llo_original>
